<compile_context>
chip_gen: v7x
topology: tpu7x:2x2x1
jax: 0.10.0
libtpu: 0.0.40
codegen_flags: <defaults>
</compile_context>

<pallas_src>
import functools
import math

import jax
import jax.numpy as jnp
from jax import lax
from jax.experimental import pallas as pl
from jax.experimental.pallas import tpu as pltpu


def _pair(v):
    return v if isinstance(v, tuple) else (v, v)


_VMEM_TILE_BUDGET = 12 * 1024 * 1024   # per-step block budget (safe for v7x 64 MiB VMEM)


def _choose_m_tiles(m_total, bytes_per_row):
    """Rows-per-tile (multiple of 8 sublanes) and tile count for the flat M axis."""
    max_tm = max(8, (_VMEM_TILE_BUDGET // max(bytes_per_row, 1)) // 8 * 8)
    nt = max(1, pl.cdiv(m_total, max_tm))
    if nt == 1 and m_total >= 16:
        nt = 2   # two balanced parallel steps keep both v7x TensorCores busy
    tm = pl.cdiv(pl.cdiv(m_total, nt), 8) * 8
    nt = pl.cdiv(m_total, tm)
    return tm, nt


# ----------------------------- Pallas kernel --------------------------------
def _matmul_kernel(a_ref, w_ref, o_ref, *, precision):
    """One M-tile of the im2col matmul (bias already folded into w_ref).

    a_ref: (TM, K)          im2col rows (+ ones column), mxu_dtype
    w_ref: (K, C_out_pad)   flattened weights + bias row, resident across tiles
    o_ref: (TM, C_out_pad)  lane-dense output tile
    """
    o_ref[...] = jnp.dot(a_ref[...], w_ref[...],
                         precision=precision,
                         preferred_element_type=jnp.float32).astype(o_ref.dtype)


# ----------------------------- conv wrapper ----------------------------------
@functools.partial(jax.jit,
                   static_argnames=("stride", "padding", "dilation", "mxu_dtype"))
def conv2d_pallas(x, weight, bias, *, stride=1, padding=1, dilation=1,
                  mxu_dtype=jnp.bfloat16):
    """2-D convolution (cross-correlation, PyTorch nn.Conv2d semantics).

    x:      (N, C_in, H, W)        NCHW (PyTorch layout)
    weight: (C_out, C_in, KH, KW)  OIHW (PyTorch layout)
    bias:   (C_out,)
    """
    sh, sw = _pair(stride)
    ph, pw = _pair(padding)
    dh, dw = _pair(dilation)

    n, c_in, h, w = x.shape
    c_out, _, kh, kw = weight.shape

    h_pad, w_pad = h + 2 * ph, w + 2 * pw
    h_out = (h_pad - dh * (kh - 1) - 1) // sh + 1
    w_out = (w_pad - dw * (kw - 1) - 1) // sw + 1

    k_taps = kh * kw * c_in
    k_tot = k_taps + 1                      # + ones column for the folded bias
    c_out_pad = pl.cdiv(c_out, 128) * 128   # lane-dense output channels

    # --- im2col built in the jitted wrapper (fuses with transpose/pad/cast) ---
    x_nhwc = jnp.pad(jnp.transpose(x, (0, 2, 3, 1)).astype(mxu_dtype),
                     ((0, 0), (ph, ph), (pw, pw), (0, 0)))
    patches = []
    for i in range(kh):
        for j in range(kw):
            h0, w0 = i * dh, j * dw
            patches.append(
                x_nhwc[:, h0:h0 + (h_out - 1) * sh + 1:sh,
                          w0:w0 + (w_out - 1) * sw + 1:sw, :])
    patches.append(jnp.ones((n, h_out, w_out, 1), mxu_dtype))   # bias column
    m_total = n * h_out * w_out
    im2col = jnp.concatenate(patches, axis=-1).reshape(m_total, k_tot)

    in_isz = jnp.dtype(mxu_dtype).itemsize
    out_isz = jnp.dtype(x.dtype).itemsize
    bytes_per_row = 2 * (k_tot * in_isz + c_out_pad * out_isz)  # dbl-buffered in+out
    tm, nt = _choose_m_tiles(m_total, bytes_per_row)
    m_pad = tm * nt
    if m_pad != m_total:
        im2col = jnp.pad(im2col, ((0, m_pad - m_total), (0, 0)))

    # Weights: OIHW -> (KH*KW*C_in, C_out), bias row appended, channel-padded,
    # cast once for the MXU (K ordering matches the (i, j, c_in) patch concat).
    w_flat = jnp.transpose(weight, (2, 3, 1, 0)).reshape(k_taps, c_out)
    w_aug = jnp.concatenate([w_flat, bias.reshape(1, c_out)], axis=0)
    w_aug = jnp.pad(w_aug, ((0, 0), (0, c_out_pad - c_out))).astype(mxu_dtype)

    precision = lax.Precision.HIGHEST if mxu_dtype == jnp.float32 else None
    kernel = functools.partial(_matmul_kernel, precision=precision)

    # VMEM limit derived from the actual footprint (v7x has only 64 MiB VMEM).
    footprint = (2 * tm * (k_tot * in_isz + c_out_pad * out_isz)
                 + k_tot * c_out_pad * in_isz)
    vmem_limit = int(min(max(2 * footprint, 8 * 1024 * 1024), 32 * 1024 * 1024))

    out = pl.pallas_call(
        kernel,
        out_shape=jax.ShapeDtypeStruct((m_pad, c_out_pad), x.dtype),
        grid=(nt,),
        in_specs=[
            pl.BlockSpec((tm, k_tot), lambda i: (i, 0)),
            pl.BlockSpec((k_tot, c_out_pad), lambda i: (0, 0)),   # resident
        ],
        out_specs=pl.BlockSpec((tm, c_out_pad), lambda i: (i, 0)),
        compiler_params=pltpu.CompilerParams(
            dimension_semantics=("parallel",),
            vmem_limit_bytes=vmem_limit),
    )(im2col, w_aug)

    # Drop row/lane padding; flat M index is (n, h_out, w_out) row-major -> NCHW.
    # TODO(synk): if the surrounding model stays channels-last, return the NHWC
    # view directly and skip this transpose (and the NCHW->NHWC one above).
    out = out[:m_total, :c_out].reshape(n, h_out, w_out, c_out)
    return jnp.transpose(out, (0, 3, 1, 2))


# --------------------------- Module equivalents -------------------------------
class DilatedConv2dPallas:
    """JAX/Pallas port of mira.basics.DilatedConv2d (the conditioner block)."""

    def __init__(self, in_channels, out_channels, kernel_size=3, stride=1,
                 padding=1, dilation=1, *, key, mxu_dtype=jnp.bfloat16):
        self.dilation = dilation
        if isinstance(dilation, tuple) and isinstance(dilation[0], float):
            conv_dilation = (math.ceil(dilation[0]), math.ceil(dilation[1]))
            self.fractional = True
        elif isinstance(dilation, float):
            conv_dilation = math.ceil(dilation)
            self.fractional = True
        else:
            conv_dilation = dilation
            self.fractional = False

        self.stride = stride
        self.padding = padding
        self.conv_dilation = conv_dilation
        self.mxu_dtype = mxu_dtype

        ks = kernel_size if isinstance(kernel_size, tuple) else (kernel_size, kernel_size)
        kw_key, kb_key = jax.random.split(key)
        fan_in = in_channels * ks[0] * ks[1]
        bound = 1.0 / math.sqrt(fan_in)
        # Deterministic init (uniform(-1/sqrt(fan_in), 1/sqrt(fan_in)), PyTorch-style).
        self.weight = jax.random.uniform(
            kw_key, (out_channels, in_channels, ks[0], ks[1]),
            jnp.float32, -bound, bound)
        self.bias = jax.random.uniform(
            kb_key, (out_channels,), jnp.float32, -bound, bound)

    @staticmethod
    def _bilinear_resize(x, scale_hw):
        # F.interpolate(mode='bilinear', align_corners=False): out = floor(in*scale).
        # TODO(synk): PyTorch's recompute_scale_factor coordinate math can differ
        # from jax.image.resize by sub-pixel amounts when in*scale is non-integer;
        # antialias disabled to match PyTorch defaults.
        n, c, h, w = x.shape
        new_h = int(math.floor(h * scale_hw[0]))
        new_w = int(math.floor(w * scale_hw[1]))
        return jax.image.resize(x, (n, c, new_h, new_w),
                                method="bilinear", antialias=False)

    def __call__(self, x):
        ratio_hw = None
        if self.fractional:
            if isinstance(self.dilation, tuple):
                dmax1, dmax2 = math.ceil(self.dilation[0]), math.ceil(self.dilation[1])
                ratio_hw = (dmax1 / self.dilation[0], dmax2 / self.dilation[1])
            else:
                dmax = math.ceil(self.dilation)
                r = dmax / self.dilation
                ratio_hw = (r, r)
            x = self._bilinear_resize(x, ratio_hw)

        x = conv2d_pallas(x, self.weight, self.bias,
                          stride=self.stride, padding=self.padding,
                          dilation=self.conv_dilation, mxu_dtype=self.mxu_dtype)

        if self.fractional:
            x = self._bilinear_resize(x, (1.0 / ratio_hw[0], 1.0 / ratio_hw[1]))
        return x


class HybridConditionerPallas:
    """JAX/Pallas port of mira.basics.HybridConditioner.

    TODO(synk): the original builds its sub-conditioners via
    instantiate_from_config; here they are concrete DilatedConv2dPallas modules.
    """

    def __init__(self, concat_conditioner, crossattn_conditioner):
        self.concat_conditioner = concat_conditioner
        self.crossattn_conditioner = crossattn_conditioner

    def __call__(self, c_concat, c_crossattn):
        c_concat = self.concat_conditioner(c_concat)
        c_crossattn = self.crossattn_conditioner(c_crossattn)
        return {'c_concat': [c_concat], 'c_crossattn': [c_crossattn]}


# --------------------------------- Demo --------------------------------------
if __name__ == "__main__":
    key = jax.random.PRNGKey(0)
    k_cc, k_ca, k_m1, k_m2 = jax.random.split(key, 4)

    # Small shapes: N=2, C_in=4, H=W=16.
    c_concat = jax.random.normal(k_cc, (2, 4, 16, 16), jnp.float32)
    c_crossattn = jax.random.normal(k_ca, (2, 4, 16, 16), jnp.float32)

    concat_cond = DilatedConv2dPallas(4, 8, kernel_size=3, stride=1, padding=1,
                                      dilation=2, key=k_m1)        # integer dilation
    crossattn_cond = DilatedConv2dPallas(4, 8, kernel_size=3, stride=1, padding=1,
                                         dilation=1.5, key=k_m2)   # fractional dilation
    model = HybridConditionerPallas(concat_cond, crossattn_cond)

    out = model(c_concat, c_crossattn)
    for leaf in jax.tree_util.tree_leaves(out):
        jax.block_until_ready(leaf)
    assert out['c_concat'][0].shape == (2, 8, 14, 14), out['c_concat'][0].shape
    assert out['c_crossattn'][0].shape == (2, 8, 14, 14), out['c_crossattn'][0].shape

    # --- strict correctness: f32 MXU path vs XLA conv (both full precision) ---
    y32 = conv2d_pallas(c_concat, concat_cond.weight, concat_cond.bias,
                        stride=1, padding=1, dilation=2, mxu_dtype=jnp.float32)
    ref = lax.conv_general_dilated(
        c_concat, concat_cond.weight, window_strides=(1, 1),
        padding=((1, 1), (1, 1)), rhs_dilation=(2, 2),
        dimension_numbers=("NCHW", "OIHW", "NCHW"),
        precision=lax.Precision.HIGHEST,
    ) + concat_cond.bias[None, :, None, None]
    assert y32.shape == ref.shape, (y32.shape, ref.shape)
    assert jnp.allclose(y32, ref, atol=2e-4, rtol=2e-4), \
        float(jnp.max(jnp.abs(y32 - ref)))

    # --- default bf16 MXU path vs bf16 XLA conv (same operand rounding) ---
    ybf = conv2d_pallas(c_concat, concat_cond.weight, concat_cond.bias,
                        stride=1, padding=1, dilation=2)   # bf16 default
    ref_bf = lax.conv_general_dilated(
        c_concat.astype(jnp.bfloat16), concat_cond.weight.astype(jnp.bfloat16),
        window_strides=(1, 1), padding=((1, 1), (1, 1)), rhs_dilation=(2, 2),
        dimension_numbers=("NCHW", "OIHW", "NCHW"),
        preferred_element_type=jnp.float32,
    ) + concat_cond.bias[None, :, None, None]
    assert jnp.allclose(ybf, ref_bf, atol=2e-2, rtol=2e-2), \
        float(jnp.max(jnp.abs(ybf - ref_bf)))

    print("KERNEL_OK")
</pallas_src>

<mosaic_0001>
module attributes {stable_mosaic.version = 11 : i64} {
  func.func @_matmul_kernel(%arg0: i32, %arg1: memref<200x37xbf16, #tpu.memory_space<vmem>>, %arg2: memref<37x128xbf16, #tpu.memory_space<vmem>>, %arg3: memref<200x128xf32, #tpu.memory_space<vmem>>) attributes {dimension_semantics = [#tpu.dimension_semantics<parallel>], iteration_bounds = array<i64: 2>, scalar_prefetch = 0 : i64, scratch_operands = 0 : i64, tpu.core_type = #tpu.core_type<tc>, window_params = [{transform_indices = @transform_0, window_bounds = array<i64: 200, 37>}, {pipeline_mode = #tpu.pipeline_mode<synchronous>, transform_indices = @transform_1, window_bounds = array<i64: 37, 128>}, {transform_indices = @transform_2, window_bounds = array<i64: 200, 128>}]} {
    %c0 = arith.constant 0 : index
    %c0_0 = arith.constant 0 : index
    %0 = vector.load %arg1[%c0, %c0_0] : memref<200x37xbf16, #tpu.memory_space<vmem>>, vector<200x37xbf16>
    %c0_1 = arith.constant 0 : index
    %c0_2 = arith.constant 0 : index
    %1 = vector.load %arg2[%c0_1, %c0_2] : memref<37x128xbf16, #tpu.memory_space<vmem>>, vector<37x128xbf16>
    %cst = arith.constant dense<0.000000e+00> : vector<200x128xf32>
    %2 = tpu.matmul %0, %1, %cst {dimension_numbers = #tpu.dot_dimension_numbers<[1], [0], [0], [1], [0, 0, 1, 1], [], []>} : vector<200x37xbf16>, vector<37x128xbf16>, vector<200x128xf32> -> vector<200x128xf32>
    %c0_3 = arith.constant 0 : index
    %c0_4 = arith.constant 0 : index
    %3 = vector.load %arg3[%c0_3, %c0_4] : memref<200x128xf32, #tpu.memory_space<vmem>>, vector<200x128xf32>
    tpu.vector_store %arg3[%c0_3, %c0_4], %2 {strides = array<i32>} : memref<200x128xf32, #tpu.memory_space<vmem>>, vector<200x128xf32>,
    return
  }
  func.func @transform_0(%arg0: i32) -> (i32, i32) {
    %c0_i32 = arith.constant 0 : i32
    %c0_i32_0 = arith.constant 0 : i32
    return %arg0, %c0_i32 : i32, i32
  }
  func.func @transform_1(%arg0: i32) -> (i32, i32) {
    %c0_i32 = arith.constant 0 : i32
    %c0_i32_0 = arith.constant 0 : i32
    %c0_i32_1 = arith.constant 0 : i32
    return %c0_i32, %c0_i32_0 : i32, i32
  }
  func.func @transform_2(%arg0: i32) -> (i32, i32) {
    %c0_i32 = arith.constant 0 : i32
    %c0_i32_0 = arith.constant 0 : i32
    return %arg0, %c0_i32 : i32, i32
  }
}

</mosaic_0001>

<llo_original>
// kernel: conv2d_pallas.1
$region0: #{conv2d_pallas.1}
  #allocation0 [shape = 'u32[]', space=smem, size = 0x4, offset = 0x4, fixed_abs, tag = 'smem constant byte address 0x4 - core index']
  #allocation1 [shape = 'u32[144,128]{1,0:T(1,128)}', space=vmem, size = 0x12000, scoped, tag = 'internal scratch']
  %s0 = inlined_call_operand.vmem [shape: bf16[400,37], index: 0, kind: input, shape index: {}]
  %s1 = inlined_call_operand.vmem [shape: bf16[37,128], index: 1, kind: input, shape index: {}]
  %s2 = inlined_call_operand.vmem [shape: f32[400,128], index: 2, kind: output, shape index: {}]
  %s3 = sld [smem:[#allocation0]]
  $region41: #{conv2d_pallas.1} parent=0
    _
  %s5 = ssub.s32 1, %s3
  %s6 = scalar_select 0, %s5, %s3
  loop: start=0, step=1, limit=4
  $region2: #{conv2d_pallas.1} parent=0 // loop_pre_header
    _
  $region3: #{conv2d_pallas.1} parent=0 // loop_header
    %s8 = sphi 0, %s12
    %p9 = scmp.ge.s32.totalorder %s8, 4
    %s18 = sphi 0, %s20
    %s21 = sphi 0, %s18
    %s22 = sphi 0, %s21
    %s38 = sphi 0, %s22
    %s42 = sphi 0, %s42
    %s44 = sphi 0, %s42
    %s45 = sphi 0, %s44
    %s59 = sphi 0, %s45
    %s65 = sphi 0, %s67
    %s68 = sphi 0, %s65
    %s69 = sphi 0, %s68
    %s85 = sphi 0, %s69
  $region4: #{conv2d_pallas.1} parent=0 // loop_header_branch
    %11 = sbr.rel (%p9) target = $region8
  $region5: #{conv2d_pallas.1} parent=0 // loop_body
    %s13 = ssub.s32 %s8, 1
    %s14 = ssub.s32 %s8, 2
    %s15 = sadd.s32 %s8, 1
    %s16 = ssub.s32 %s8, %s15
    %p17 = scmp.eq.s32.totalorder %s16, 0
    %s19 = sadd.s32 %s18, 1
    %s20 = scalar_select %p17, %s18, %s19
    %p23 = pneg %p17
    %p24 = scmp.eq.s32.totalorder %s8, 1
    %p25 = por %p23, %p24
    %p26 = scmp.ne.s32.totalorder %s18, %s21
    %p27 = scmp.eq.s32.totalorder %s8, 0
    %p28 = por %p26, %p27
    %p29 = scmp.ne.s32.totalorder %s18, %s21
    %p30 = scmp.eq.s32.totalorder %s13, 1
    %p31 = por %p29, %p30
    %p32 = scmp.ne.s32.totalorder %s21, %s22
    %p33 = scmp.eq.s32.totalorder %s13, 0
    %p34 = por %p32, %p33
    %p35 = scmp.ne.s32.totalorder %s21, %s22
    %p36 = scmp.eq.s32.totalorder %s14, 1
    %p37 = por %p35, %p36
    %p39 = scmp.ne.s32.totalorder %s22, %s38
    %p40 = scmp.eq.s32.totalorder %s14, 0
    %p41 = por %p39, %p40
    %s43 = sadd.s32 %s42, 1
    %p46 = scmp.eq.s32.totalorder %s8, 1
    %p47 = scmp.ne.s32.totalorder %s42, %s44
    %p48 = scmp.eq.s32.totalorder %s8, 0
    %p49 = por %p47, %p48
    %p50 = scmp.ne.s32.totalorder %s42, %s44
    %p51 = scmp.eq.s32.totalorder %s13, 1
    %p52 = por %p50, %p51
    %p53 = scmp.ne.s32.totalorder %s44, %s45
    %p54 = scmp.eq.s32.totalorder %s13, 0
    %p55 = por %p53, %p54
    %p56 = scmp.ne.s32.totalorder %s44, %s45
    %p57 = scmp.eq.s32.totalorder %s14, 1
    %p58 = por %p56, %p57
    %p60 = scmp.ne.s32.totalorder %s45, %s59
    %p61 = scmp.eq.s32.totalorder %s14, 0
    %p62 = por %p60, %p61
    %s63 = ssub.s32 %s8, %s15
    %p64 = scmp.eq.s32.totalorder %s63, 0
    %s66 = sadd.s32 %s65, 1
    %s67 = scalar_select %p64, %s65, %s66
    %p70 = pneg %p64
    %p71 = scmp.eq.s32.totalorder %s8, 1
    %p72 = por %p70, %p71
    %p73 = scmp.ne.s32.totalorder %s65, %s68
    %p74 = scmp.eq.s32.totalorder %s8, 0
    %p75 = por %p73, %p74
    %p76 = scmp.ne.s32.totalorder %s65, %s68
    %p77 = scmp.eq.s32.totalorder %s13, 1
    %p78 = por %p76, %p77
    %p79 = scmp.ne.s32.totalorder %s68, %s69
    %p80 = scmp.eq.s32.totalorder %s13, 0
    %p81 = por %p79, %p80
    %p82 = scmp.ne.s32.totalorder %s68, %s69
    %p83 = scmp.eq.s32.totalorder %s14, 1
    %p84 = por %p82, %p83
    %p86 = scmp.ne.s32.totalorder %s69, %s85
    %p87 = scmp.eq.s32.totalorder %s14, 0
    %p88 = por %p86, %p87
    %p89 = scmp.le.s32.totalorder 1, %s8
    %p90 = scmp.lt.s32.totalorder %s8, 3
    %p91 = pnand %p89, %p90
    %p92 = pneg %p91
    // Predicated region
    $region9: #{conv2d_pallas.1} parent=5 // pred_check
      _
    $region10: #{conv2d_pallas.1} parent=5 // pred_check_branch
      %94 = sbr.rel (%p91) target = $region12
    $region11: #{conv2d_pallas.1} parent=5 // pred_region
      %s95 = ssub.s32 %s8, 1
      // Predicated region
      $region13: #{conv2d_pallas.1} parent=11 // pred_check
        %p96 = pneg %p55
      $region14: #{conv2d_pallas.1} parent=11 // pred_check_branch
        %98 = sbr.rel (%p96) target = $region16
      $region15: #{conv2d_pallas.1} parent=11 // pred_region
        _
      $region16: #{conv2d_pallas.1} parent=11 // pred_fallthru
        _
    $region12: #{conv2d_pallas.1} parent=5 // pred_fallthru
      _
    %p99 = scmp.lt.s32.totalorder %s8, 2
    // Predicated region
    $region17: #{conv2d_pallas.1} parent=5 // pred_check
      %p100 = pneg %p99
    $region18: #{conv2d_pallas.1} parent=5 // pred_check_branch
      %102 = sbr.rel (%p100) target = $region20
    $region19: #{conv2d_pallas.1} parent=5 // pred_region
      // Predicated region
      $region21: #{conv2d_pallas.1} parent=19 // pred_check
        %p103 = pneg %p28
      $region22: #{conv2d_pallas.1} parent=19 // pred_check_branch
        %105 = sbr.rel (%p103) target = $region24
      $region23: #{conv2d_pallas.1} parent=19 // pred_region
        %s106 = smul.u32 25, %s8
        %p107 = scmp.lt.s32.totalorder %s106, 49
        %s108 = scalar_select %p107, %s106, 49
        %s109 = smul.addr %s108, 4
        %s110 = scalar_lea.vmem %s0, %s109
        %s111 = smul.u32 25, %s8
      $region24: #{conv2d_pallas.1} parent=19 // pred_fallthru
        _
    $region20: #{conv2d_pallas.1} parent=5 // pred_fallthru
      _
    %p112 = scmp.le.s32.totalorder 1, %s8
    %p113 = scmp.lt.s32.totalorder %s8, 3
    %p114 = pnand %p112, %p113
    %p115 = pneg %p114
    // Predicated region
    $region25: #{conv2d_pallas.1} parent=5 // pred_check
      _
    $region26: #{conv2d_pallas.1} parent=5 // pred_check_branch
      %117 = sbr.rel (%p114) target = $region28
    $region27: #{conv2d_pallas.1} parent=5 // pred_region
      %s118 = ssub.s32 %s8, 1
      %s119 = smul.u32 25, %s13
      %p120 = scmp.lt.s32.totalorder %s119, 49
      %s121 = scalar_select %p120, %s119, 49
      %s122 = smul.addr %s121, 4
      %s123 = scalar_lea.vmem %s0, %s122
      %p124 = pneg %p34
      %p125 = pneg %p31
      %p126 = pneg %p55
      %p127 = pneg %p52
      %p128 = pneg %p81
      %p129 = pneg %p78
      %s130 = smul.u32 25, %s13
      %p131 = scmp.lt.s32.totalorder %s130, 49
      %s132 = scalar_select %p131, %s130, 49
      %s133 = smul.addr %s132, 8
      %s134 = scalar_lea.vmem %s2, %s133
      %s135 = smul.u32 25, %s13
      %p136 = scmp.lt.s32.totalorder %s135, 49
      %s137 = scalar_select %p136, %s135, 49
      %s138 = smul.addr %s137, 4
      %s139 = scalar_lea.vmem %s0, %s138
      %s140 = smul.u32 25, %s13
      %s141 = smul.u32 25, %s13
      %p142 = scmp.lt.s32.totalorder %s141, 49
      %s143 = scalar_select %p142, %s141, 49
      %s144 = smul.addr %s143, 8
      %s145 = scalar_lea.vmem %s2, %s144
      %s146 = smul.u32 25, %s13
      %v148 = vld [vmem:[%s139] sm:$0xf]
      %v149 = vld [vmem:[%s139 + $0x4] sm:$0xf]
      %v150 = vld [vmem:[%s139 + $0x8] sm:$0xf]
      %v151 = vld [vmem:[%s139 + $0xc] sm:$0xf]
      %v152 = vld [vmem:[%s139 + $0x10] sm:$0xf]
      %v153 = vld [vmem:[%s139 + $0x14] sm:$0xf]
      %v154 = vld [vmem:[%s139 + $0x18] sm:$0xf]
      %v155 = vld [vmem:[%s139 + $0x1c] sm:$0xf]
      %v156 = vld [vmem:[%s139 + $0x20] sm:$0xf]
      %v157 = vld [vmem:[%s139 + $0x24] sm:$0xf]
      %v158 = vld [vmem:[%s139 + $0x28] sm:$0xf]
      %v159 = vld [vmem:[%s139 + $0x2c] sm:$0xf]
      %v160 = vld [vmem:[%s139 + $0x30] sm:$0xf]
      %v161 = vld [vmem:[%s139 + $0x34] sm:$0xf]
      %v162 = vld [vmem:[%s139 + $0x38] sm:$0xf]
      %v163 = vld [vmem:[%s139 + $0x3c] sm:$0xf]
      %v164 = vld [vmem:[%s139 + $0x40] sm:$0xf]
      %v165 = vld [vmem:[%s139 + $0x44] sm:$0xf]
      %v166 = vld [vmem:[%s139 + $0x48] sm:$0xf]
      %v167 = vld [vmem:[%s139 + $0x4c] sm:$0xf]
      %v168 = vld [vmem:[%s139 + $0x50] sm:$0xf]
      %v169 = vld [vmem:[%s139 + $0x54] sm:$0xf]
      %v170 = vld [vmem:[%s139 + $0x58] sm:$0xf]
      %v171 = vld [vmem:[%s139 + $0x5c] sm:$0xf]
      %v172 = vld [vmem:[%s139 + $0x60] sm:$0xf]
      %v173 = vld [vmem:[%s1] sm:$0xf]
      %v174 = vld [vmem:[%s1 + $0x4] sm:$0xf]
      %v175 = vld [vmem:[%s1 + $0x8] sm:$0xf]
      %v176 = vld [vmem:[%s1 + $0xc] sm:$0xf]
      %v177 = vld [vmem:[%s1 + $0x10] sm:$0x7]
      %v203 = vunpack.c.l.b16 %v148
      %v204 = vunpack.c.l.b16 %v149
      %v205 = vunpack.c.l.b16 %v150
      %v206 = vunpack.c.l.b16 %v151
      %v207 = vunpack.c.l.b16 %v152
      %v208 = vunpack.c.l.b16 %v153
      %v209 = vunpack.c.l.b16 %v154
      %v210 = vunpack.c.l.b16 %v155
      %v211 = vunpack.c.l.b16 %v156
      %v212 = vunpack.c.l.b16 %v157
      %v213 = vunpack.c.l.b16 %v158
      %v214 = vunpack.c.l.b16 %v159
      %v215 = vunpack.c.l.b16 %v160
      %v216 = vunpack.c.l.b16 %v161
      %v217 = vunpack.c.l.b16 %v162
      %v218 = vunpack.c.l.b16 %v163
      %v219 = vunpack.c.l.b16 %v164
      %v220 = vunpack.c.l.b16 %v165
      %v221 = vunpack.c.l.b16 %v166
      %v222 = vunpack.c.l.b16 %v167
      %v223 = vunpack.c.l.b16 %v168
      %v224 = vunpack.c.l.b16 %v169
      %v225 = vunpack.c.l.b16 %v170
      %v226 = vunpack.c.l.b16 %v171
      %v227 = vunpack.c.l.b16 %v172
      %v228 = vpack.c.b16 %v204, %v203
      %v229 = vpack.c.b16 %v206, %v205
      %v230 = vpack.c.b16 %v208, %v207
      %v231 = vpack.c.b16 %v210, %v209
      %v232 = vpack.c.b16 %v212, %v211
      %v233 = vpack.c.b16 %v214, %v213
      %v234 = vpack.c.b16 %v216, %v215
      %v235 = vpack.c.b16 %v218, %v217
      %v236 = vpack.c.b16 %v220, %v219
      %v237 = vpack.c.b16 %v222, %v221
      %v238 = vpack.c.b16 %v224, %v223
      %v239 = vpack.c.b16 %v226, %v225
      %v240 = vpack.c.b16 %v227, %v227
      %v246 = vunpack.c.l.b16 %v173
      %v247 = vunpack.c.l.b16 %v174
      %v248 = vunpack.c.l.b16 %v175
      %v249 = vunpack.c.l.b16 %v176
      %v250 = vunpack.c.l.b16 %v177
      %v251 = vpack.c.b16 %v247, %v246
      %v252 = vpack.c.b16 %v249, %v248
      %v253 = vpack.c.b16 %v250, %v250
      %vm256 = vcmask 302080
      %v258 = vsel %vm256, %v228, 0
      %v261 = vsel %vm256, %v229, 0
      %v264 = vsel %vm256, %v230, 0
      %v267 = vsel %vm256, %v231, 0
      %v270 = vsel %vm256, %v232, 0
      %v273 = vsel %vm256, %v233, 0
      %v276 = vsel %vm256, %v234, 0
      %v279 = vsel %vm256, %v235, 0
      %v282 = vsel %vm256, %v236, 0
      %v285 = vsel %vm256, %v237, 0
      %v288 = vsel %vm256, %v238, 0
      %v291 = vsel %vm256, %v239, 0
      %v294 = vsel %vm256, %v240, 0
      %vm296 = vcmask 1041408
      %vm297 = vcmask 1042432
      %v298 = vsel %vm296, 4294967295, 65535
      %v299 = vsel %vm297, %v298, 0
      %v301 = vand.u32 %v253, %v299
      %303 = vmatprep.subr.bf16.mxu0 0
      %304 = vmatpush1.bf16.msra.mxu0 %v251
      %305 = vmatprep.subr.bf16.mxu0 0
      %306 = vmatpush1.bf16.msra.mxu0 %v252
      %307 = vmatprep.subr.bf16.mxu0 0
      %308 = vmatpush1.bf16.msra.mxu0 %v301
      %309 = vmatprep.subr.bf16.mxu0 0
      %310 = vmatpush1.bf16.msra.mxu0 0
      %311 = vmatprep.subr.bf16.mxu0 0
      %312 = vmatpush1.bf16.msra.mxu0 0
      %313 = vmatprep.subr.bf16.mxu0 0
      %314 = vmatpush1.bf16.msra.mxu0 0
      %315 = vmatprep.subr.bf16.mxu0 0
      %316 = vmatpush1.bf16.msra.mxu0 0
      %317 = vmatprep.subr.bf16.mxu0 0
      %318 = vmatpush1.bf16.msra.mxu0 0
      %319 = vmatprep.subr.bf16.mxu0 0
      %320 = vmatpush1.bf16.msra.mxu0 0
      %321 = vmatprep.subr.bf16.mxu0 0
      %322 = vmatpush1.bf16.msra.mxu0 0
      %323 = vmatprep.subr.bf16.mxu0 0
      %324 = vmatpush1.bf16.msra.mxu0 0
      %325 = vmatprep.subr.bf16.mxu0 0
      %326 = vmatpush1.bf16.msra.mxu0 0
      %327 = vmatprep.subr.bf16.mxu0 0
      %328 = vmatpush1.bf16.msra.mxu0 0
      %329 = vmatprep.subr.bf16.mxu0 0
      %330 = vmatpush1.bf16.msra.mxu0 0
      %331 = vmatprep.subr.bf16.mxu0 0
      %332 = vmatpush1.bf16.msra.mxu0 0
      %333 = vmatprep.subr.bf16.mxu0 0
      %334 = vmatpush1.bf16.msra.mxu0 0
      %335 = vmatprep.mubr.bf16.mxu0 0
      %336 = vmatmul.mubr.bf16.gmra.mrb[0].mxu0 %v258
      %v337 = vpop.f32.mrb[0].mxu0
      %v338 = vadd.f32 0.0, %v337
      %v339 = vpop.f32.mrb[0].mxu0
      %v340 = vpop.f32.mrb[0].mxu0
      %v341 = vadd.f32 0.0, %v340
      %v342 = vpop.f32.mrb[0].mxu0
      %343 = vmatprep.mubr.bf16.mxu0 0
      %344 = vmatmul.mubr.bf16.gmra.mrb[0].mxu0 %v261
      %v345 = vpop.f32.mrb[0].mxu0
      %v346 = vadd.f32 0.0, %v345
      %v347 = vpop.f32.mrb[0].mxu0
      %v348 = vpop.f32.mrb[0].mxu0
      %v349 = vadd.f32 0.0, %v348
      %v350 = vpop.f32.mrb[0].mxu0
      %351 = vmatprep.mubr.bf16.mxu0 0
      %352 = vmatmul.mubr.bf16.gmra.mrb[0].mxu0 %v264
      %v353 = vpop.f32.mrb[0].mxu0
      %v354 = vadd.f32 0.0, %v353
      %v355 = vpop.f32.mrb[0].mxu0
      %v356 = vpop.f32.mrb[0].mxu0
      %v357 = vadd.f32 0.0, %v356
      %v358 = vpop.f32.mrb[0].mxu0
      %359 = vmatprep.mubr.bf16.mxu0 0
      %360 = vmatmul.mubr.bf16.gmra.mrb[0].mxu0 %v267
      %v361 = vpop.f32.mrb[0].mxu0
      %v362 = vadd.f32 0.0, %v361
      %v363 = vpop.f32.mrb[0].mxu0
      %v364 = vpop.f32.mrb[0].mxu0
      %v365 = vadd.f32 0.0, %v364
      %v366 = vpop.f32.mrb[0].mxu0
      %367 = vmatprep.mubr.bf16.mxu0 0
      %368 = vmatmul.mubr.bf16.gmra.mrb[0].mxu0 %v270
      %v369 = vpop.f32.mrb[0].mxu0
      %v370 = vadd.f32 0.0, %v369
      %v371 = vpop.f32.mrb[0].mxu0
      %v372 = vpop.f32.mrb[0].mxu0
      %v373 = vadd.f32 0.0, %v372
      %v374 = vpop.f32.mrb[0].mxu0
      %375 = vmatprep.mubr.bf16.mxu0 0
      %376 = vmatmul.mubr.bf16.gmra.mrb[0].mxu0 %v273
      %v377 = vpop.f32.mrb[0].mxu0
      %v378 = vadd.f32 0.0, %v377
      %v379 = vpop.f32.mrb[0].mxu0
      %v380 = vpop.f32.mrb[0].mxu0
      %v381 = vadd.f32 0.0, %v380
      %v382 = vpop.f32.mrb[0].mxu0
      %383 = vmatprep.mubr.bf16.mxu0 0
      %384 = vmatmul.mubr.bf16.gmra.mrb[0].mxu0 %v276
      %v385 = vpop.f32.mrb[0].mxu0
      %v386 = vadd.f32 0.0, %v385
      %v387 = vpop.f32.mrb[0].mxu0
      %v388 = vpop.f32.mrb[0].mxu0
      %v389 = vadd.f32 0.0, %v388
      %v390 = vpop.f32.mrb[0].mxu0
      %391 = vmatprep.mubr.bf16.mxu0 0
      %392 = vmatmul.mubr.bf16.gmra.mrb[0].mxu0 %v279
      %v393 = vpop.f32.mrb[0].mxu0
      %v394 = vadd.f32 0.0, %v393
      %v395 = vpop.f32.mrb[0].mxu0
      %v396 = vpop.f32.mrb[0].mxu0
      %v397 = vadd.f32 0.0, %v396
      %v398 = vpop.f32.mrb[0].mxu0
      %399 = vmatprep.mubr.bf16.mxu0 0
      %400 = vmatmul.mubr.bf16.gmra.mrb[0].mxu0 %v282
      %v401 = vpop.f32.mrb[0].mxu0
      %v402 = vadd.f32 0.0, %v401
      %v403 = vpop.f32.mrb[0].mxu0
      %v404 = vpop.f32.mrb[0].mxu0
      %v405 = vadd.f32 0.0, %v404
      %v406 = vpop.f32.mrb[0].mxu0
      %407 = vmatprep.mubr.bf16.mxu0 0
      %408 = vmatmul.mubr.bf16.gmra.mrb[0].mxu0 %v285
      %v409 = vpop.f32.mrb[0].mxu0
      %v410 = vadd.f32 0.0, %v409
      %v411 = vpop.f32.mrb[0].mxu0
      %v412 = vpop.f32.mrb[0].mxu0
      %v413 = vadd.f32 0.0, %v412
      %v414 = vpop.f32.mrb[0].mxu0
      %415 = vmatprep.mubr.bf16.mxu0 0
      %416 = vmatmul.mubr.bf16.gmra.mrb[0].mxu0 %v288
      %v417 = vpop.f32.mrb[0].mxu0
      %v418 = vadd.f32 0.0, %v417
      %v419 = vpop.f32.mrb[0].mxu0
      %v420 = vpop.f32.mrb[0].mxu0
      %v421 = vadd.f32 0.0, %v420
      %v422 = vpop.f32.mrb[0].mxu0
      %423 = vmatprep.mubr.bf16.mxu0 0
      %424 = vmatmul.mubr.bf16.gmra.mrb[0].mxu0 %v291
      %v425 = vpop.f32.mrb[0].mxu0
      %v426 = vadd.f32 0.0, %v425
      %v427 = vpop.f32.mrb[0].mxu0
      %v428 = vpop.f32.mrb[0].mxu0
      %v429 = vadd.f32 0.0, %v428
      %v430 = vpop.f32.mrb[0].mxu0
      %431 = vmatprep.mubr.bf16.mxu0 0
      %432 = vmatmul.mubr.bf16.gmra.mrb[0].mxu0 %v294
      %v433 = vpop.f32.mrb[0].mxu0
      %v434 = vadd.f32 0.0, %v433
      %v435 = vpop.f32.mrb[0].mxu0
      %v436 = vpop.f32.mrb[0].mxu0
      %v437 = vpop.f32.mrb[0].mxu0
      %438 = vdwg.mxu0
      %439 = vst [vmem:[%s145] sm:$0xff] %v338
      %440 = vst [vmem:[%s145 + $0x8] sm:$0xff] %v341
      %441 = vst [vmem:[%s145 + $0x10] sm:$0xff] %v346
      %442 = vst [vmem:[%s145 + $0x18] sm:$0xff] %v349
      %443 = vst [vmem:[%s145 + $0x20] sm:$0xff] %v354
      %444 = vst [vmem:[%s145 + $0x28] sm:$0xff] %v357
      %445 = vst [vmem:[%s145 + $0x30] sm:$0xff] %v362
      %446 = vst [vmem:[%s145 + $0x38] sm:$0xff] %v365
      %447 = vst [vmem:[%s145 + $0x40] sm:$0xff] %v370
      %448 = vst [vmem:[%s145 + $0x48] sm:$0xff] %v373
      %449 = vst [vmem:[%s145 + $0x50] sm:$0xff] %v378
      %450 = vst [vmem:[%s145 + $0x58] sm:$0xff] %v381
      %451 = vst [vmem:[%s145 + $0x60] sm:$0xff] %v386
      %452 = vst [vmem:[%s145 + $0x68] sm:$0xff] %v389
      %453 = vst [vmem:[%s145 + $0x70] sm:$0xff] %v394
      %454 = vst [vmem:[%s145 + $0x78] sm:$0xff] %v397
      %455 = vst [vmem:[%s145 + $0x80] sm:$0xff] %v402
      %456 = vst [vmem:[%s145 + $0x88] sm:$0xff] %v405
      %457 = vst [vmem:[%s145 + $0x90] sm:$0xff] %v410
      %458 = vst [vmem:[%s145 + $0x98] sm:$0xff] %v413
      %459 = vst [vmem:[%s145 + $0xa0] sm:$0xff] %v418
      %460 = vst [vmem:[%s145 + $0xa8] sm:$0xff] %v421
      %461 = vst [vmem:[%s145 + $0xb0] sm:$0xff] %v426
      %462 = vst [vmem:[%s145 + $0xb8] sm:$0xff] %v429
      %463 = vst [vmem:[%s145 + $0xc0] sm:$0xff] %v434
      %s464 = smul.u32 25, %s13
      %p465 = scmp.lt.s32.totalorder %s464, 49
      %s466 = scalar_select %p465, %s464, 49
      %s467 = smul.addr %s466, 8
      %s468 = scalar_lea.vmem %s2, %s467
      // Predicated region
      $region29: #{conv2d_pallas.1} parent=27 // pred_check
        %p469 = pneg %p78
      $region30: #{conv2d_pallas.1} parent=27 // pred_check_branch
        %471 = sbr.rel (%p469) target = $region32
      $region31: #{conv2d_pallas.1} parent=27 // pred_region
        %s472 = smul.u32 25, %s13
      $region32: #{conv2d_pallas.1} parent=27 // pred_fallthru
        _
    $region28: #{conv2d_pallas.1} parent=5 // pred_fallthru
      _
    %p473 = scmp.le.s32.totalorder 2, %s8
    // Predicated region
    $region33: #{conv2d_pallas.1} parent=5 // pred_check
      %p474 = pneg %p473
    $region34: #{conv2d_pallas.1} parent=5 // pred_check_branch
      %476 = sbr.rel (%p474) target = $region36
    $region35: #{conv2d_pallas.1} parent=5 // pred_region
      %s477 = ssub.s32 %s8, 2
      // Predicated region
      $region37: #{conv2d_pallas.1} parent=35 // pred_check
        %p478 = pneg %p84
      $region38: #{conv2d_pallas.1} parent=35 // pred_check_branch
        %480 = sbr.rel (%p478) target = $region40
      $region39: #{conv2d_pallas.1} parent=35 // pred_region
        %s481 = smul.u32 25, %s14
        %p482 = scmp.lt.s32.totalorder %s481, 49
        %s483 = scalar_select %p482, %s481, 49
        %s484 = smul.addr %s483, 8
        %s485 = scalar_lea.vmem %s2, %s484
      $region40: #{conv2d_pallas.1} parent=35 // pred_fallthru
        _
    $region36: #{conv2d_pallas.1} parent=5 // pred_fallthru
      _
  $region6: #{conv2d_pallas.1} parent=0 // loop_footer
    %s12 = sadd.s32 1, %s8
  $region7: #{conv2d_pallas.1} parent=0 // loop_footer_branch
    %7 = sbr.rel target = $region3
  $region8: #{conv2d_pallas.1} parent=0 // loop_exit
    _

</llo_original>
